<compile_context>
chip_gen: v7x
topology: tpu7x:2x2x1
jax: 0.10.0
libtpu: 0.0.40
codegen_flags: <defaults>
</compile_context>

<pallas_src>
import functools

import jax
import jax.numpy as jnp
from jax.experimental import pallas as pl
from jax.experimental.pallas import tpu as pltpu


# v7x-safe tile defaults (64 MiB physical / 32 MiB scoped VMEM): per-step VMEM
# with double buffering at 512x512, D=64 is ~1 MiB of bf16 blocks plus a few
# MiB of f32 score temporaries — well under every generation's default scoped
# limit, so vmem_limit_bytes stays at its default.
_MAX_TQ = 512
_MAX_TK = 512


def _round_up(x, m):
    return ((x + m - 1) // m) * m


def _pick_head_block(heads, dim_head):
    """Heads processed per attention grid step; Hb*D must be 128-lane dense."""
    for hb in (2, 4, 1, heads):
        if heads % hb == 0 and (hb * dim_head) % 128 == 0:
            return hb
    # TODO(synk): head widths that can't tile to a multiple of 128 lanes fall
    # back to single-head (sub-128-lane) blocks.
    return 1


# ----------------------------------------------------------------------------
# 1) Fused wide projection: (B, Npad, C) bf16 @ (C, F) bf16 -> (B, Npad, F) bf16
# ----------------------------------------------------------------------------
def _proj_kernel(x_ref, w_ref, o_ref):
    o_ref[0] = jnp.dot(
        x_ref[0], w_ref[...], preferred_element_type=jnp.float32
    ).astype(o_ref.dtype)


def pallas_proj(x, w, tn):
    """One wide GEMM per (batch, row-tile); the weight block stays resident."""
    B, Np, C = x.shape
    F = w.shape[1]
    return pl.pallas_call(
        _proj_kernel,
        out_shape=jax.ShapeDtypeStruct((B, Np, F), jnp.bfloat16),
        grid_spec=pltpu.PrefetchScalarGridSpec(
            num_scalar_prefetch=0,
            grid=(B, Np // tn),
            in_specs=[
                pl.BlockSpec((1, tn, C), lambda b, n: (b, n, 0)),
                pl.BlockSpec((C, F), lambda b, n: (0, 0)),
            ],
            out_specs=pl.BlockSpec((1, tn, F), lambda b, n: (b, n, 0)),
        ),
        compiler_params=pltpu.CompilerParams(
            dimension_semantics=("parallel", "parallel")
        ),
    )(x, w)


# ----------------------------------------------------------------------------
# 2) Flash attention (head-pair blocked, online softmax over kv tiles)
# ----------------------------------------------------------------------------
def _flash_attn_kernel(q_ref, k_ref, v_ref, bias_ref, o_ref,
                       m_sc, l_sc, acc_sc, *, hb, d, need_mask):
    ki = pl.program_id(3)

    @pl.when(ki == 0)
    def _():
        m_sc[...] = jnp.full_like(m_sc, -jnp.inf)
        l_sc[...] = jnp.zeros_like(l_sc)
        acc_sc[...] = jnp.zeros_like(acc_sc)

    q_all = q_ref[0]   # (tq, hb*d) bf16 (softmax scale folded into Wq)
    k_all = k_ref[0]   # (tk, hb*d) bf16
    v_all = v_ref[0]   # (tk, hb*d) bf16

    # Static unroll over the hb heads in this block (hb*d = 128 lanes).
    for h in range(hb):
        lo, hi = h * d, (h + 1) * d
        q = q_all[:, lo:hi]          # (tq, d)
        k = k_all[:, lo:hi]          # (tk, d)
        v = v_all[:, lo:hi]          # (tk, d)

        # bf16 MXU matmul, f32 accumulation; contracting dims (1,1) avoid k.T.
        s = jax.lax.dot_general(
            q, k, (((1,), (1,)), ((), ())), preferred_element_type=jnp.float32
        )  # (tq, tk) f32

        if need_mask:  # static: single broadcast add of the precomputed bias
            s = s + bias_ref[...]    # (1, tk) -> (tq, tk)

        m_prev = m_sc[h]                                       # (tq, 1)
        m_new = jnp.maximum(m_prev, s.max(axis=-1, keepdims=True))
        alpha = jnp.exp(m_prev - m_new)
        p = jnp.exp(s - m_new)                                 # (tq, tk) f32

        l_sc[h] = alpha * l_sc[h] + p.sum(axis=-1, keepdims=True)
        acc_sc[h] = alpha * acc_sc[h] + jnp.dot(
            p.astype(v.dtype), v, preferred_element_type=jnp.float32
        )
        m_sc[h] = m_new

    @pl.when(ki == pl.num_programs(3) - 1)
    def _():
        # Normalize per head and emit one lane-dense (tq, hb*d) store.
        out = jnp.concatenate(
            [acc_sc[h] * pl.reciprocal(l_sc[h], approx=True) for h in range(hb)],
            axis=-1,
        )
        o_ref[0] = out.astype(o_ref.dtype)


def pallas_flash_attention(q_arr, k_arr, v_arr, bias, *, heads, hb,
                           q_blk_off, k_blk_off, v_blk_off,
                           dim_head, tq, tk, need_mask):
    """q/k/v live on the lane axis of (possibly shared) (B, Npad, G*D) arrays.

    *_blk_off select which (hb*D)-wide lane blocks belong to Q / K / V; the
    arrays may alias (fused self-attention QKV).  Returns (B, Nq_pad, H*D) bf16
    laid out exactly as rearrange('b n h d -> b n (h d)').
    """
    B, Nq_pad, _ = q_arr.shape
    Nk_pad = k_arr.shape[1]
    D = dim_head
    grid = (B, heads // hb, Nq_pad // tq, Nk_pad // tk)

    kernel = functools.partial(_flash_attn_kernel, hb=hb, d=D,
                               need_mask=need_mask)
    return pl.pallas_call(
        kernel,
        out_shape=jax.ShapeDtypeStruct((B, Nq_pad, heads * D), jnp.bfloat16),
        grid_spec=pltpu.PrefetchScalarGridSpec(
            num_scalar_prefetch=0,
            grid=grid,
            in_specs=[
                pl.BlockSpec((1, tq, hb * D),
                             lambda b, hg, qi, ki: (b, qi, q_blk_off + hg)),
                pl.BlockSpec((1, tk, hb * D),
                             lambda b, hg, qi, ki: (b, ki, k_blk_off + hg)),
                pl.BlockSpec((1, tk, hb * D),
                             lambda b, hg, qi, ki: (b, ki, v_blk_off + hg)),
                pl.BlockSpec((1, tk), lambda b, hg, qi, ki: (0, ki)),
            ],
            out_specs=pl.BlockSpec((1, tq, hb * D),
                                   lambda b, hg, qi, ki: (b, qi, hg)),
            scratch_shapes=[
                pltpu.VMEM((hb, tq, 1), jnp.float32),   # running max (per head)
                pltpu.VMEM((hb, tq, 1), jnp.float32),   # running sum (per head)
                pltpu.VMEM((hb, tq, D), jnp.float32),   # output accumulator
            ],
        ),
        compiler_params=pltpu.CompilerParams(
            dimension_semantics=("parallel", "parallel", "parallel", "arbitrary")
        ),
    )(q_arr, k_arr, v_arr, bias)


# ----------------------------------------------------------------------------
# 3) Output projection: one GEMM (tn, H*D) @ (H*D, Cout) + bias per row-tile
# ----------------------------------------------------------------------------
def _out_proj_kernel(a_ref, w_ref, b_ref, o_ref):
    o_ref[0] = (
        jnp.dot(a_ref[0], w_ref[...], preferred_element_type=jnp.float32)
        + b_ref[...]
    ).astype(o_ref.dtype)


def pallas_out_proj(att, w, b, tn):
    """att: (B, Npad, H*D) bf16, w: (H*D, Cout) bf16, b: (Cout,) -> (B, Npad, Cout) f32."""
    B, Np, F = att.shape
    Cout = w.shape[1]
    b2 = b.reshape(1, Cout).astype(jnp.float32)
    return pl.pallas_call(
        _out_proj_kernel,
        out_shape=jax.ShapeDtypeStruct((B, Np, Cout), jnp.float32),
        grid_spec=pltpu.PrefetchScalarGridSpec(
            num_scalar_prefetch=0,
            grid=(B, Np // tn),
            in_specs=[
                pl.BlockSpec((1, tn, F), lambda bi, ni: (bi, ni, 0)),
                pl.BlockSpec((F, Cout), lambda bi, ni: (0, 0)),
                pl.BlockSpec((1, Cout), lambda bi, ni: (0, 0)),
            ],
            out_specs=pl.BlockSpec((1, tn, Cout), lambda bi, ni: (bi, ni, 0)),
        ),
        compiler_params=pltpu.CompilerParams(
            dimension_semantics=("parallel", "parallel")
        ),
    )(att, w, b2)


# ----------------------------------------------------------------------------
# Full module forward
# ----------------------------------------------------------------------------
def init_params(key, query_dim, context_dim, heads, dim_head):
    inner_dim = heads * dim_head
    k1, k2, k3, k4 = jax.random.split(key, 4)
    # nn.Linear weights stored pre-transposed: (in_features, out_features)
    return {
        "wq": jax.random.normal(k1, (query_dim, inner_dim), jnp.float32)
        / jnp.sqrt(query_dim),
        "wk": jax.random.normal(k2, (context_dim, inner_dim), jnp.float32)
        / jnp.sqrt(context_dim),
        "wv": jax.random.normal(k3, (context_dim, inner_dim), jnp.float32)
        / jnp.sqrt(context_dim),
        "wo": jax.random.normal(k4, (inner_dim, query_dim), jnp.float32)
        / jnp.sqrt(inner_dim),
        "bo": jnp.zeros((query_dim,), jnp.float32),
    }


def flash_attention_forward(params, x, context=None, *, heads, dim_head):
    self_attn = context is None
    context = x if context is None else context
    B, Nq, Cq = x.shape
    _, Nk, Ck = context.shape
    H, D = heads, dim_head
    scale = D ** (-0.5)
    hb = _pick_head_block(H, D)

    # Tile sizes (multiples of 16 for bf16 sublane packing).  For sequences
    # shorter than the cap the padded length equals the tile (single kv tile),
    # so the bias block is always either full-width or 128-lane aligned.
    tq = min(_MAX_TQ, _round_up(Nq, 16))
    tk = min(_MAX_TK, _round_up(Nk, 16))
    Nq_pad = _round_up(Nq, tq)
    Nk_pad = _round_up(Nk, tk)
    need_mask = Nk_pad != Nk

    # Additive tail mask for padded K/V columns (0 / -1e30), broadcast-added
    # to the scores; cheaper than per-step iota+compare+select.
    col = jnp.arange(Nk_pad)
    bias = jnp.where(col < Nk, 0.0, -1e30).astype(jnp.float32).reshape(1, Nk_pad)

    # Weights kept in natural (C, H*D) layout (lane-major heads), bf16 for the
    # MXU; softmax scale folded into Wq so the attention kernel never scales.
    wq = (params["wq"] * scale).astype(jnp.bfloat16)   # (Cq, H*D)
    wk = params["wk"].astype(jnp.bfloat16)             # (Ck, H*D)
    wv = params["wv"].astype(jnp.bfloat16)             # (Ck, H*D)
    wo = params["wo"].astype(jnp.bfloat16)             # (H*D, Cq)

    x_b = x.astype(jnp.bfloat16)
    if Nq_pad != Nq:
        x_b = jnp.pad(x_b, ((0, 0), (0, Nq_pad - Nq), (0, 0)))

    if self_attn:
        # One fused wide projection for Q, K and V: single read of x, one GEMM
        # per row-tile, lane-dense (3*H*D)-wide stores.
        w_all = jnp.concatenate([wq, wk, wv], axis=1)          # (Cq, 3*H*D)
        qkv = pallas_proj(x_b, w_all, tq)                      # (B, Nq_pad, 3*H*D)
        q_arr = k_arr = v_arr = qkv
        q_off, k_off, v_off = 0, H // hb, 2 * (H // hb)        # (hb*D)-block units
    else:
        c_b = context.astype(jnp.bfloat16)
        if Nk_pad != Nk:
            c_b = jnp.pad(c_b, ((0, 0), (0, Nk_pad - Nk), (0, 0)))
        q_arr = pallas_proj(x_b, wq, tq)                       # (B, Nq_pad, H*D)
        kv = pallas_proj(c_b, jnp.concatenate([wk, wv], axis=1), tk)  # (B, Nk_pad, 2*H*D)
        k_arr = v_arr = kv
        q_off, k_off, v_off = 0, 0, H // hb

    att = pallas_flash_attention(
        q_arr, k_arr, v_arr, bias, heads=H, hb=hb,
        q_blk_off=q_off, k_blk_off=k_off, v_blk_off=v_off,
        dim_head=D, tq=tq, tk=tk, need_mask=need_mask,
    )                                                          # (B, Nq_pad, H*D) bf16

    y = pallas_out_proj(att, wo, params["bo"], tq)             # (B, Nq_pad, Cq) f32
    return y[:, :Nq, :]


# ----------------------------------------------------------------------------
# Reference (pure JAX, mirrors the PyTorch module) for a sanity check
# ----------------------------------------------------------------------------
def reference_forward(params, x, context=None, *, heads, dim_head):
    context = x if context is None else context
    B, Nq, _ = x.shape
    _, Nk, _ = context.shape
    scale = dim_head ** (-0.5)
    q = (x @ params["wq"]).astype(jnp.bfloat16)
    k = (context @ params["wk"]).astype(jnp.bfloat16)
    v = (context @ params["wv"]).astype(jnp.bfloat16)
    q = q.reshape(B, Nq, heads, dim_head).transpose(0, 2, 1, 3)
    k = k.reshape(B, Nk, heads, dim_head).transpose(0, 2, 1, 3)
    v = v.reshape(B, Nk, heads, dim_head).transpose(0, 2, 1, 3)
    s = jnp.einsum("bhqd,bhkd->bhqk", q.astype(jnp.float32), k.astype(jnp.float32)) * scale
    p = jax.nn.softmax(s, axis=-1)
    o = jnp.einsum("bhqk,bhkd->bhqd", p, v.astype(jnp.float32)).astype(jnp.bfloat16)
    o = o.transpose(0, 2, 1, 3).reshape(B, Nq, heads * dim_head).astype(jnp.float32)
    return o @ params["wo"] + params["bo"]


if __name__ == "__main__":
    # small shapes consistent with the module: (B, N, query_dim)
    B, N, query_dim = 2, 8, 32
    heads, dim_head = 2, 64

    key = jax.random.PRNGKey(0)
    kx, kc, kp, kp2 = jax.random.split(key, 4)
    x = jax.random.normal(kx, (B, N, query_dim), jnp.float32)

    # --- self-attention ---
    params = init_params(kp, query_dim, query_dim, heads, dim_head)
    out = flash_attention_forward(params, x, heads=heads, dim_head=dim_head)
    out = jax.block_until_ready(out)
    ref = reference_forward(params, x, heads=heads, dim_head=dim_head)
    assert out.shape == (B, N, query_dim)
    assert jnp.allclose(out, ref, atol=5e-2, rtol=5e-2)

    # --- cross-attention (different context length and width) ---
    context_dim, Nk = 48, 12
    ctx = jax.random.normal(kc, (B, Nk, context_dim), jnp.float32)
    params_x = init_params(kp2, query_dim, context_dim, heads, dim_head)
    out_x = flash_attention_forward(params_x, x, ctx, heads=heads, dim_head=dim_head)
    out_x = jax.block_until_ready(out_x)
    ref_x = reference_forward(params_x, x, ctx, heads=heads, dim_head=dim_head)
    assert out_x.shape == (B, N, query_dim)
    assert jnp.allclose(out_x, ref_x, atol=5e-2, rtol=5e-2)

    print("KERNEL_OK")
</pallas_src>

<mosaic_0001>
module attributes {stable_mosaic.version = 11 : i64} {
  func.func @_proj_kernel(%arg0: i32, %arg1: i32, %arg2: memref<1x16x32xbf16, #tpu.memory_space<vmem>>, %arg3: memref<32x384xbf16, #tpu.memory_space<vmem>>, %arg4: memref<1x16x384xbf16, #tpu.memory_space<vmem>>) attributes {dimension_semantics = [#tpu.dimension_semantics<parallel>, #tpu.dimension_semantics<parallel>], iteration_bounds = array<i64: 2, 1>, scalar_prefetch = 0 : i64, scratch_operands = 0 : i64, tpu.core_type = #tpu.core_type<tc>, window_params = [{transform_indices = @transform_0, window_bounds = array<i64: 1, 16, 32>}, {pipeline_mode = #tpu.pipeline_mode<synchronous>, transform_indices = @transform_1, window_bounds = array<i64: 32, 384>}, {transform_indices = @transform_2, window_bounds = array<i64: 1, 16, 384>}]} {
    %c0 = arith.constant 0 : index
    %c0_0 = arith.constant 0 : index
    %c0_1 = arith.constant 0 : index
    %0 = vector.load %arg2[%c0, %c0_0, %c0_1] : memref<1x16x32xbf16, #tpu.memory_space<vmem>>, vector<1x16x32xbf16>
    %1 = vector.shape_cast %0 : vector<1x16x32xbf16> to vector<16x32xbf16>
    %c0_2 = arith.constant 0 : index
    %c0_3 = arith.constant 0 : index
    %2 = vector.load %arg3[%c0_2, %c0_3] : memref<32x384xbf16, #tpu.memory_space<vmem>>, vector<32x384xbf16>
    %cst = arith.constant dense<0.000000e+00> : vector<16x384xf32>
    %3 = tpu.matmul %1, %2, %cst {dimension_numbers = #tpu.dot_dimension_numbers<[1], [0], [0], [1], [0, 0, 1, 1], [], []>} : vector<16x32xbf16>, vector<32x384xbf16>, vector<16x384xf32> -> vector<16x384xf32>
    %4 = arith.truncf %3 : vector<16x384xf32> to vector<16x384xbf16>
    %c0_4 = arith.constant 0 : index
    %c0_5 = arith.constant 0 : index
    %c0_6 = arith.constant 0 : index
    %5 = vector.load %arg4[%c0_4, %c0_5, %c0_6] : memref<1x16x384xbf16, #tpu.memory_space<vmem>>, vector<1x16x384xbf16>
    %6 = vector.shape_cast %5 : vector<1x16x384xbf16> to vector<16x384xbf16>
    %7 = vector.shape_cast %4 : vector<16x384xbf16> to vector<1x16x384xbf16>
    tpu.vector_store %arg4[%c0_4, %c0_5, %c0_6], %7 {strides = array<i32>} : memref<1x16x384xbf16, #tpu.memory_space<vmem>>, vector<1x16x384xbf16>,
    return
  }
  func.func @transform_0(%arg0: i32, %arg1: i32) -> (i32, i32, i32) {
    %c0_i32 = arith.constant 0 : i32
    %c0_i32_0 = arith.constant 0 : i32
    return %arg0, %arg1, %c0_i32 : i32, i32, i32
  }
  func.func @transform_1(%arg0: i32, %arg1: i32) -> (i32, i32) {
    %c0_i32 = arith.constant 0 : i32
    %c0_i32_0 = arith.constant 0 : i32
    %c0_i32_1 = arith.constant 0 : i32
    return %c0_i32, %c0_i32_0 : i32, i32
  }
  func.func @transform_2(%arg0: i32, %arg1: i32) -> (i32, i32, i32) {
    %c0_i32 = arith.constant 0 : i32
    %c0_i32_0 = arith.constant 0 : i32
    return %arg0, %arg1, %c0_i32 : i32, i32, i32
  }
}

</mosaic_0001>

<llo_original>
// kernel: tpu_custom_call.1
$region0: #{tpu_custom_call.1}
  #allocation0 [shape = 'u32[]', space=smem, size = 0x4, offset = 0x4, fixed_abs, tag = 'smem constant byte address 0x4 - core index']
  #allocation1 [shape = 'u32[144,128]{1,0:T(1,128)}', space=vmem, size = 0x12000, scoped, tag = 'internal scratch']
  %s0 = inlined_call_operand.hbm [shape: bf16[2,16,32], index: 0, kind: input, shape index: {}]
  %s1 = inlined_call_operand.hbm [shape: bf16[32,384], index: 1, kind: input, shape index: {}]
  %s2 = inlined_call_operand.hbm [shape: bf16[2,16,384], index: 2, kind: output, shape index: {}]
  %s3 = sld [smem:[#allocation0]]
  $region49: #{tpu_custom_call.1} parent=0
    _
  %s5 = ssub.s32 1, %s3
  %s6 = scalar_select 0, %s5, %s3
  $region1: #{tpu_custom_call.1} parent=0
    #allocation2 [shape = 'u8[8192]{0}', space=vmem, size = 0x2000, scoped, tag = 'input window, operand 0']
    #allocation3 [shape = 's32[2]{0}', space=sflag, size = 0x8, scoped, tag = 'scoped memory for tpu_custom_call.1']
    #allocation4 [shape = 's32[2]{0}', space=sflag, size = 0x8, scoped, tag = 'scoped memory for tpu_custom_call.1']
    #allocation5 [shape = 'u8[24576]{0}', space=vmem, size = 0x6000, scoped, tag = 'input window, operand 1, single buffered']
    #allocation6 [shape = 's32[1]{0}', space=sflag, size = 0x4, scoped, tag = 'scoped memory for tpu_custom_call.1']
    #allocation7 [shape = 'u8[24576]{0}', space=vmem, size = 0x6000, scoped, tag = 'output window, operand 0']
    %7 = vsyncpa [#allocation3], 0
    %s8 = scalar_lea.sflag [#allocation3], 1
    %9 = vsyncpa %s8, 0
    %10 = vsyncpa [#allocation6], 0
    %11 = vsyncpa [#allocation4], 0
    %s12 = scalar_lea.sflag [#allocation4], 1
    %13 = vsyncpa %s12, 0
    loop: start=0, step=1, limit=4
    $region2: #{tpu_custom_call.1} parent=1 // loop_pre_header
      _
    $region3: #{tpu_custom_call.1} parent=1 // loop_header
      %s15 = sphi 0, %s19
      %p16 = scmp.ge.s32.totalorder %s15, 4
      %s22 = sphi 0, %s34
      %s23 = sphi 0, %s30
      %s24 = sphi 0, %s22
      %s25 = sphi 0, %s23
      %s26 = sphi 0, %s24
      %s27 = sphi 0, %s25
      %s39 = sphi 0, %s41
      %s42 = sphi 0, %s39
      %s43 = sphi 0, %s42
      %s59 = sphi 0, %s43
      %s63 = sphi 0, %s63
      %s65 = sphi 0, %s63
      %s66 = sphi 0, %s65
      %s80 = sphi 0, %s66
      %s88 = sphi 0, %s90
      %s91 = sphi 0, %s88
      %s92 = sphi 0, %s91
      %s108 = sphi 0, %s92
    $region4: #{tpu_custom_call.1} parent=1 // loop_header_branch
      %18 = sbr.rel (%p16) target = $region8
    $region5: #{tpu_custom_call.1} parent=1 // loop_body
      %s20 = ssub.s32 %s15, 1
      %s21 = ssub.s32 %s15, 2
      %s28 = sadd.s32 1, %s23
      %p29 = scmp.ge.s32.totalorder %s28, 1
      %s30 = scalar_select %p29, 0, %s28
      %s31 = sadd.s32 1, %s22
      %s32 = scalar_select %p29, %s31, %s22
      %p33 = scmp.ge.s32.totalorder %s32, 2
      %s34 = scalar_select %p33, 0, %s32
      %s35 = ssub.s32 %s22, %s34
      %s36 = ssub.s32 %s23, %s30
      %s37 = sor.u32 %s35, %s36
      %p38 = scmp.eq.s32.totalorder %s37, 0
      %s40 = sadd.s32 %s39, 1
      %s41 = scalar_select %p38, %s39, %s40
      %p44 = pneg %p38
      %p45 = scmp.eq.s32.totalorder %s15, 1
      %p46 = por %p44, %p45
      %p47 = scmp.ne.s32.totalorder %s39, %s42
      %p48 = scmp.eq.s32.totalorder %s15, 0
      %p49 = por %p47, %p48
      %p50 = scmp.ne.s32.totalorder %s39, %s42
      %p51 = scmp.eq.s32.totalorder %s20, 1
      %p52 = por %p50, %p51
      %p53 = scmp.ne.s32.totalorder %s42, %s43
      %p54 = scmp.eq.s32.totalorder %s20, 0
      %p55 = por %p53, %p54
      %p56 = scmp.ne.s32.totalorder %s42, %s43
      %p57 = scmp.eq.s32.totalorder %s21, 1
      %p58 = por %p56, %p57
      %p60 = scmp.ne.s32.totalorder %s43, %s59
      %p61 = scmp.eq.s32.totalorder %s21, 0
      %p62 = por %p60, %p61
      %s64 = sadd.s32 %s63, 1
      %p67 = scmp.eq.s32.totalorder %s15, 1
      %p68 = scmp.ne.s32.totalorder %s63, %s65
      %p69 = scmp.eq.s32.totalorder %s15, 0
      %p70 = por %p68, %p69
      %p71 = scmp.ne.s32.totalorder %s63, %s65
      %p72 = scmp.eq.s32.totalorder %s20, 1
      %p73 = por %p71, %p72
      %p74 = scmp.ne.s32.totalorder %s65, %s66
      %p75 = scmp.eq.s32.totalorder %s20, 0
      %p76 = por %p74, %p75
      %p77 = scmp.ne.s32.totalorder %s65, %s66
      %p78 = scmp.eq.s32.totalorder %s21, 1
      %p79 = por %p77, %p78
      %p81 = scmp.ne.s32.totalorder %s66, %s80
      %p82 = scmp.eq.s32.totalorder %s21, 0
      %p83 = por %p81, %p82
      %s84 = ssub.s32 %s22, %s34
      %s85 = ssub.s32 %s23, %s30
      %s86 = sor.u32 %s84, %s85
      %p87 = scmp.eq.s32.totalorder %s86, 0
      %s89 = sadd.s32 %s88, 1
      %s90 = scalar_select %p87, %s88, %s89
      %p93 = pneg %p87
      %p94 = scmp.eq.s32.totalorder %s15, 1
      %p95 = por %p93, %p94
      %p96 = scmp.ne.s32.totalorder %s88, %s91
      %p97 = scmp.eq.s32.totalorder %s15, 0
      %p98 = por %p96, %p97
      %p99 = scmp.ne.s32.totalorder %s88, %s91
      %p100 = scmp.eq.s32.totalorder %s20, 1
      %p101 = por %p99, %p100
      %p102 = scmp.ne.s32.totalorder %s91, %s92
      %p103 = scmp.eq.s32.totalorder %s20, 0
      %p104 = por %p102, %p103
      %p105 = scmp.ne.s32.totalorder %s91, %s92
      %p106 = scmp.eq.s32.totalorder %s21, 1
      %p107 = por %p105, %p106
      %p109 = scmp.ne.s32.totalorder %s92, %s108
      %p110 = scmp.eq.s32.totalorder %s21, 0
      %p111 = por %p109, %p110
      %p112 = scmp.le.s32.totalorder 1, %s15
      %p113 = scmp.lt.s32.totalorder %s15, 3
      %p114 = pnand %p112, %p113
      %p115 = pneg %p114
      // Predicated region
      $region9: #{tpu_custom_call.1} parent=5 // pred_check
        _
      $region10: #{tpu_custom_call.1} parent=5 // pred_check_branch
        %117 = sbr.rel (%p114) target = $region12
      $region11: #{tpu_custom_call.1} parent=5 // pred_region
        %s118 = ssub.s32 %s15, 1
        // Predicated region
        $region13: #{tpu_custom_call.1} parent=11 // pred_check
          %p119 = pneg %p76
        $region14: #{tpu_custom_call.1} parent=11 // pred_check_branch
          %121 = sbr.rel (%p119) target = $region16
        $region15: #{tpu_custom_call.1} parent=11 // pred_region
          %s123 = ssub.s32 768, 768
          %124 = vsyncadd [#allocation6], %s123
          %s125 = sshll.u32 [#allocation5], 4
          %s126 = int_to_ptr.vmem [resolvable:$true] %s125
          %131 = dma.hbm_to_vmem [thread:$0]  %s1, 768, %s126, [#allocation6], 192, 192, 12
        $region16: #{tpu_custom_call.1} parent=11 // pred_fallthru
          _
      $region12: #{tpu_custom_call.1} parent=5 // pred_fallthru
        _
      %p132 = scmp.lt.s32.totalorder %s15, 2
      // Predicated region
      $region17: #{tpu_custom_call.1} parent=5 // pred_check
        %p133 = pneg %p132
      $region18: #{tpu_custom_call.1} parent=5 // pred_check_branch
        %135 = sbr.rel (%p133) target = $region20
      $region19: #{tpu_custom_call.1} parent=5 // pred_region
        // Predicated region
        $region21: #{tpu_custom_call.1} parent=19 // pred_check
          %p136 = pneg %p49
        $region22: #{tpu_custom_call.1} parent=19 // pred_check_branch
          %138 = sbr.rel (%p136) target = $region24
        $region23: #{tpu_custom_call.1} parent=19 // pred_region
          %s139 = sand.u32 %s39, 1
          %s140 = scalar_lea.sflag [#allocation3], %s139
          %s141 = sand.u32 %s39, 1
          %s142 = smul.addr %s141, 8
          %s143 = scalar_lea.vmem [#allocation2], %s142
          %s144 = smul.u32 2, %s23
          %s146 = ssub.s32 128, 128
          %147 = vsyncadd %s140, %s146
          %s148 = smul.addr %s22, 2
          %s149 = sadd.s32 %s144, %s148
          %s150 = smul.addr %s149, 64
          %s151 = scalar_lea.hbm %s0, %s150
          %s152 = sshll.u32 %s143, 4
          %s153 = int_to_ptr.vmem [resolvable:$true] %s152
          %158 = dma.hbm_to_vmem [thread:$0]  %s151, 128, %s153, %s140, 64, 64, 4
        $region24: #{tpu_custom_call.1} parent=19 // pred_fallthru
          _
      $region20: #{tpu_custom_call.1} parent=5 // pred_fallthru
        _
      %p159 = scmp.le.s32.totalorder 1, %s15
      %p160 = scmp.lt.s32.totalorder %s15, 3
      %p161 = pnand %p159, %p160
      %p162 = pneg %p161
      // Predicated region
      $region25: #{tpu_custom_call.1} parent=5 // pred_check
        _
      $region26: #{tpu_custom_call.1} parent=5 // pred_check_branch
        %164 = sbr.rel (%p161) target = $region28
      $region27: #{tpu_custom_call.1} parent=5 // pred_region
        %s165 = ssub.s32 %s15, 1
        %s166 = sand.u32 %s42, 1
        %s167 = scalar_lea.sflag [#allocation3], %s166
        %s168 = sand.u32 %s42, 1
        %s169 = smul.addr %s168, 8
        %s170 = scalar_lea.vmem [#allocation2], %s169
        // Predicated region
        $region29: #{tpu_custom_call.1} parent=27 // pred_check
          %p171 = pneg %p55
        $region30: #{tpu_custom_call.1} parent=27 // pred_check_branch
          %173 = sbr.rel (%p171) target = $region32
        $region31: #{tpu_custom_call.1} parent=27 // pred_region
          %174 = dma.done %s167, 128
        $region32: #{tpu_custom_call.1} parent=27 // pred_fallthru
          _
        // Predicated region
        $region33: #{tpu_custom_call.1} parent=27 // pred_check
          %p175 = pneg %p76
        $region34: #{tpu_custom_call.1} parent=27 // pred_check_branch
          %177 = sbr.rel (%p175) target = $region36
        $region35: #{tpu_custom_call.1} parent=27 // pred_region
          %178 = dma.done [#allocation6], 768
        $region36: #{tpu_custom_call.1} parent=27 // pred_fallthru
          _
        %s179 = sand.u32 %s42, 1
        %s180 = scalar_lea.sflag [#allocation3], %s179
        %s181 = sand.u32 %s42, 1
        %s182 = smul.addr %s181, 8
        %s183 = scalar_lea.vmem [#allocation2], %s182
        %p184 = pneg %p55
        %p185 = pneg %p52
        %p186 = pneg %p76
        %p187 = pneg %p73
        %p188 = pneg %p104
        %p189 = pneg %p101
        %s190 = sand.u32 %s91, 1
        %s191 = scalar_lea.sflag [#allocation4], %s190
        %s192 = sand.u32 %s91, 1
        %s193 = smul.addr %s192, 24
        %s194 = scalar_lea.vmem [#allocation7], %s193
        %s195 = smul.u32 2, %s25
        %s196 = smul.u32 2, %s25
        %v198 = vld [vmem:[%s170] sm:$0xf]
        %v199 = vld [vmem:[%s170 + $0x4] sm:$0xf]
        %v200 = vld [vmem:[#allocation5] sm:$0xff]
        %v201 = vld [vmem:[#allocation5 + $0x8] sm:$0xf]
        %v202 = vld [vmem:[#allocation5 + $0xc] sm:$0xff]
        %v203 = vld [vmem:[#allocation5 + $0x14] sm:$0xf]
        %v204 = vld [vmem:[#allocation5 + $0x18] sm:$0xff]
        %v205 = vld [vmem:[#allocation5 + $0x20] sm:$0xf]
        %v206 = vld [vmem:[#allocation5 + $0x24] sm:$0xff]
        %v207 = vld [vmem:[#allocation5 + $0x2c] sm:$0xf]
        %v210 = vunpack.c.l.b16 %v198
        %v211 = vunpack.c.l.b16 %v199
        %v212 = vpack.c.b16 %v211, %v210
        %v221 = vunpack.c.l.b16 %v200
        %v222 = vunpack.c.h.b16 %v200
        %v223 = vunpack.c.l.b16 %v201
        %v224 = vunpack.c.l.b16 %v202
        %v225 = vunpack.c.h.b16 %v202
        %v226 = vunpack.c.l.b16 %v203
        %v227 = vunpack.c.l.b16 %v204
        %v228 = vunpack.c.h.b16 %v204
        %v229 = vunpack.c.l.b16 %v205
        %v230 = vunpack.c.l.b16 %v206
        %v231 = vunpack.c.h.b16 %v206
        %v232 = vunpack.c.l.b16 %v207
        %v233 = vpack.c.b16 %v224, %v221
        %v234 = vpack.c.b16 %v225, %v222
        %v235 = vpack.c.b16 %v226, %v223
        %v236 = vpack.c.b16 %v230, %v227
        %v237 = vpack.c.b16 %v231, %v228
        %v238 = vpack.c.b16 %v232, %v229
        %vm245 = vcmask 261120
        %v247 = vsel %vm245, %v212, 0
        %249 = vmatprep.subr.bf16.mxu0 %v234
        %250 = vmatpush1.bf16.msra.mxu0 %v233
        %251 = vmatprep.subr.bf16.mxu0 %v237
        %252 = vmatpush1.bf16.msra.mxu0 %v236
        %253 = vmatprep.subr.bf16.mxu0 0
        %254 = vmatpush1.bf16.msra.mxu0 0
        %255 = vmatprep.subr.bf16.mxu0 0
        %256 = vmatpush1.bf16.msra.mxu0 0
        %257 = vmatprep.subr.bf16.mxu0 0
        %258 = vmatpush1.bf16.msra.mxu0 0
        %259 = vmatprep.subr.bf16.mxu0 0
        %260 = vmatpush1.bf16.msra.mxu0 0
        %261 = vmatprep.subr.bf16.mxu0 0
        %262 = vmatpush1.bf16.msra.mxu0 0
        %263 = vmatprep.subr.bf16.mxu0 0
        %264 = vmatpush1.bf16.msra.mxu0 0
        %265 = vmatprep.subr.bf16.mxu0 0
        %266 = vmatpush1.bf16.msra.mxu0 0
        %267 = vmatprep.subr.bf16.mxu0 0
        %268 = vmatpush1.bf16.msra.mxu0 0
        %269 = vmatprep.subr.bf16.mxu0 0
        %270 = vmatpush1.bf16.msra.mxu0 0
        %271 = vmatprep.subr.bf16.mxu0 0
        %272 = vmatpush1.bf16.msra.mxu0 0
        %273 = vmatprep.subr.bf16.mxu0 0
        %274 = vmatpush1.bf16.msra.mxu0 0
        %275 = vmatprep.subr.bf16.mxu0 0
        %276 = vmatpush1.bf16.msra.mxu0 0
        %277 = vmatprep.subr.bf16.mxu0 0
        %278 = vmatpush1.bf16.msra.mxu0 0
        %279 = vmatprep.subr.bf16.mxu0 0
        %280 = vmatpush1.bf16.msra.mxu0 0
        %281 = vmatprep.mubr.bf16.mxu0 0
        %282 = vmatmul.mubr.bf16.gmra.mrb[0].mxu0 %v247
        %v283 = vpop.f32.mrb[0].mxu0
        %v284 = vadd.f32 0.0, %v283
        %v285 = vpop.f32.mrb[0].mxu0
        %v286 = vadd.f32 0.0, %v285
        %v287 = vpop.f32.mrb[0].mxu0
        %v288 = vadd.f32 0.0, %v287
        %v289 = vpop.f32.mrb[0].mxu0
        %v290 = vadd.f32 0.0, %v289
        %291 = vdwg.mxu0
        %292 = vmatprep.subr.bf16.mxu0 0
        %293 = vmatpush1.bf16.msra.mxu0 %v235
        %294 = vmatprep.subr.bf16.mxu0 0
        %295 = vmatpush1.bf16.msra.mxu0 %v238
        %296 = vmatprep.subr.bf16.mxu0 0
        %297 = vmatpush1.bf16.msra.mxu0 0
        %298 = vmatprep.subr.bf16.mxu0 0
        %299 = vmatpush1.bf16.msra.mxu0 0
        %300 = vmatprep.subr.bf16.mxu0 0
        %301 = vmatpush1.bf16.msra.mxu0 0
        %302 = vmatprep.subr.bf16.mxu0 0
        %303 = vmatpush1.bf16.msra.mxu0 0
        %304 = vmatprep.subr.bf16.mxu0 0
        %305 = vmatpush1.bf16.msra.mxu0 0
        %306 = vmatprep.subr.bf16.mxu0 0
        %307 = vmatpush1.bf16.msra.mxu0 0
        %308 = vmatprep.subr.bf16.mxu0 0
        %309 = vmatpush1.bf16.msra.mxu0 0
        %310 = vmatprep.subr.bf16.mxu0 0
        %311 = vmatpush1.bf16.msra.mxu0 0
        %312 = vmatprep.subr.bf16.mxu0 0
        %313 = vmatpush1.bf16.msra.mxu0 0
        %314 = vmatprep.subr.bf16.mxu0 0
        %315 = vmatpush1.bf16.msra.mxu0 0
        %316 = vmatprep.subr.bf16.mxu0 0
        %317 = vmatpush1.bf16.msra.mxu0 0
        %318 = vmatprep.subr.bf16.mxu0 0
        %319 = vmatpush1.bf16.msra.mxu0 0
        %320 = vmatprep.subr.bf16.mxu0 0
        %321 = vmatpush1.bf16.msra.mxu0 0
        %322 = vmatprep.subr.bf16.mxu0 0
        %323 = vmatpush1.bf16.msra.mxu0 0
        %324 = vmatprep.mubr.bf16.mxu0 0
        %325 = vmatmul.mubr.bf16.gmra.mrb[0].mxu0 %v247
        %v326 = vpop.f32.mrb[0].mxu0
        %v327 = vadd.f32 0.0, %v326
        %v328 = vpop.f32.mrb[0].mxu0
        %v329 = vpop.f32.mrb[0].mxu0
        %v330 = vadd.f32 0.0, %v329
        %v331 = vpop.f32.mrb[0].mxu0
        %332 = vdwg.mxu0
        %v333 = vpack.c.bf16 %v288, %v284
        %v334 = vpack.c.bf16 %v290, %v286
        %v335 = vpack.c.bf16 %v330, %v327
        %v339 = vunpack.c.l.b16 %v333
        %v340 = vunpack.c.l.b16 %v334
        %v341 = vunpack.c.l.b16 %v335
        %v342 = vunpack.c.h.b16 %v333
        %v343 = vunpack.c.h.b16 %v334
        %v344 = vunpack.c.h.b16 %v335
        %v345 = vpack.c.b16 %v340, %v339
        %v346 = vpack.c.b16 %v341, %v341
        %v347 = vpack.c.b16 %v343, %v342
        %v348 = vpack.c.b16 %v344, %v344
        %353 = vst [vmem:[%s194] sm:$0xff] %v345
        %354 = vst [vmem:[%s194 + $0x8] sm:$0xf] %v346
        %355 = vst [vmem:[%s194 + $0xc] sm:$0xff] %v347
        %356 = vst [vmem:[%s194 + $0x14] sm:$0xf] %v348
        %s357 = sand.u32 %s91, 1
        %s358 = scalar_lea.sflag [#allocation4], %s357
        %s359 = sand.u32 %s91, 1
        %s360 = smul.addr %s359, 24
        %s361 = scalar_lea.vmem [#allocation7], %s360
        // Predicated region
        $region37: #{tpu_custom_call.1} parent=27 // pred_check
          %p362 = pneg %p101
        $region38: #{tpu_custom_call.1} parent=27 // pred_check_branch
          %364 = sbr.rel (%p362) target = $region40
        $region39: #{tpu_custom_call.1} parent=27 // pred_region
          %s365 = smul.u32 2, %s25
          %s367 = ssub.s32 384, 384
          %368 = vsyncadd %s358, %s367
          %s369 = smul.addr %s365, 3
          %s370 = smul.addr %s24, 6
          %s371 = sadd.s32 %s369, %s370
          %s372 = smul.addr %s371, 64
          %s373 = scalar_lea.hbm %s2, %s372
          %s374 = sshll.u32 %s361, 4
          %s375 = int_to_ptr.vmem [resolvable:$true] %s374
          %380 = dma.vmem_to_hbm [thread:$0]  %s375, 384, %s373, %s358, 192, 192, 12
        $region40: #{tpu_custom_call.1} parent=27 // pred_fallthru
          _
      $region28: #{tpu_custom_call.1} parent=5 // pred_fallthru
        _
      %p381 = scmp.le.s32.totalorder 2, %s15
      // Predicated region
      $region41: #{tpu_custom_call.1} parent=5 // pred_check
        %p382 = pneg %p381
      $region42: #{tpu_custom_call.1} parent=5 // pred_check_branch
        %384 = sbr.rel (%p382) target = $region44
      $region43: #{tpu_custom_call.1} parent=5 // pred_region
        %s385 = ssub.s32 %s15, 2
        // Predicated region
        $region45: #{tpu_custom_call.1} parent=43 // pred_check
          %p386 = pneg %p107
        $region46: #{tpu_custom_call.1} parent=43 // pred_check_branch
          %388 = sbr.rel (%p386) target = $region48
        $region47: #{tpu_custom_call.1} parent=43 // pred_region
          %s389 = sand.u32 %s92, 1
          %s390 = scalar_lea.sflag [#allocation4], %s389
          %s391 = sand.u32 %s92, 1
          %s392 = smul.addr %s391, 24
          %s393 = scalar_lea.vmem [#allocation7], %s392
          %394 = dma.done %s390, 384
        $region48: #{tpu_custom_call.1} parent=43 // pred_fallthru
          _
      $region44: #{tpu_custom_call.1} parent=5 // pred_fallthru
        _
    $region6: #{tpu_custom_call.1} parent=1 // loop_footer
      %s19 = sadd.s32 1, %s15
    $region7: #{tpu_custom_call.1} parent=1 // loop_footer_branch
      %14 = sbr.rel target = $region3
    $region8: #{tpu_custom_call.1} parent=1 // loop_exit
      _
    %395 = vsyncpa [#allocation3], 1
    %s396 = scalar_lea.sflag [#allocation3], 1
    %397 = vsyncpa %s396, 1
    %398 = vsyncpa [#allocation6], 1
    %399 = vsyncpa [#allocation4], 1
    %s400 = scalar_lea.sflag [#allocation4], 1
    %401 = vsyncpa %s400, 1

</llo_original>
